<compile_context>
chip_gen: v5e
topology: v5e:2x2
jax: 0.10.0
libtpu: 0.0.40
codegen_flags: <defaults>
</compile_context>

<pallas_src>
import jax
import jax.numpy as jnp
from jax.experimental import pallas as pl
from jax.experimental.pallas import tpu as pltpu

_BLOCK_BYTES_BUDGET = 4 * 1024 * 1024    # target size of one input row-block
_VMEM_LIMIT_BYTES = 56 * 1024 * 1024     # safe on v5e/v6e (128 MiB) and v7x (64 MiB)


def dwt_kernel(x_ref, psum_ref, pdiff_ref, o_ref):
    # x_ref:   (RB, W)        rows of the flattened (B*C*H, W) input
    # psum_ref/pdiff_ref: (W, W//2)  +-0.5 column-selection matrices
    # o_ref:   (4, RB//2, W//2)  subbands (LL, HL, LH, HH)
    half = x_ref.shape[0] // 2
    # Row (sublane-axis) de-interleave via strided ref reads -- cheap.
    xe = x_ref[pl.ds(0, half, stride=2), :].astype(jnp.float32)   # even rows
    xo = x_ref[pl.ds(1, half, stride=2), :].astype(jnp.float32)   # odd rows
    s = xe + xo          # row low-pass   (the /2 is folded into psum/pdiff)
    d = xo - xe          # row high-pass
    psum = psum_ref[...]
    pdiff = pdiff_ref[...]
    # Column even/odd combine on the MXU (no lane-axis strided shuffles).
    o_ref[0, :, :] = jnp.dot(s, psum, preferred_element_type=jnp.float32).astype(o_ref.dtype)   # LL
    o_ref[1, :, :] = jnp.dot(s, pdiff, preferred_element_type=jnp.float32).astype(o_ref.dtype)  # HL
    o_ref[2, :, :] = jnp.dot(d, psum, preferred_element_type=jnp.float32).astype(o_ref.dtype)   # LH
    o_ref[3, :, :] = jnp.dot(d, pdiff, preferred_element_type=jnp.float32).astype(o_ref.dtype)  # HH


def _choose_block_rows(total_rows, row_bytes, budget_bytes):
    """Largest multiple-of-16 divisor of total_rows fitting the budget.

    Falls back to the whole array when it already fits (or no suitable
    divisor exists). A multiple of 16 keeps the stride-2 row split and the
    half-height output block (8, 128)-tile aligned.
    """
    if total_rows * row_bytes <= budget_bytes:
        return total_rows
    max_rows = budget_bytes // max(row_bytes, 1)
    best = 0
    r = 16
    while r <= max_rows:
        if total_rows % r == 0:
            best = r
        r += 16
    return best if best > 0 else total_rows


def dwt(x):
    """2D Haar DWT. x: (B, C, H, W) -> (4*B, C, H//2, W//2)."""
    B, C, H, W = x.shape
    assert H % 2 == 0 and W % 2 == 0
    Hh, Wh = H // 2, W // 2
    N = B * C

    # Flatten all planes into one tall 2D array (free metadata reshape). Plane
    # boundaries always fall on even flat-row indices (H is even), so any
    # even-sized row block de-interleaves rows correctly.
    x_flat = x.reshape(N * H, W)
    total_rows = N * H

    # +-0.5 column selection matrices: (s @ psum) sums even/odd column pairs,
    # (s @ pdiff) takes odd - even; the 0.5 implements the /2 in dwt_init.
    cols = jnp.arange(W)
    j2 = 2 * jnp.arange(Wh)
    even = (cols[:, None] == j2[None, :]).astype(jnp.float32)
    odd = (cols[:, None] == (j2 + 1)[None, :]).astype(jnp.float32)
    psum = 0.5 * (even + odd)
    pdiff = 0.5 * (odd - even)

    rb = _choose_block_rows(total_rows, W * x.dtype.itemsize, _BLOCK_BYTES_BUDGET)
    grid = (total_rows // rb,)

    out = pl.pallas_call(
        dwt_kernel,
        out_shape=jax.ShapeDtypeStruct((4, N * Hh, Wh), x.dtype),
        grid=grid,
        in_specs=[
            pl.BlockSpec((rb, W), lambda i: (i, 0)),
            pl.BlockSpec((W, Wh), lambda i: (0, 0)),
            pl.BlockSpec((W, Wh), lambda i: (0, 0)),
        ],
        out_specs=pl.BlockSpec((4, rb // 2, Wh), lambda i: (0, i, 0)),
        compiler_params=pltpu.CompilerParams(
            dimension_semantics=("parallel",),
            vmem_limit_bytes=_VMEM_LIMIT_BYTES,
        ),
    )(x_flat, psum, pdiff)

    # (4, B*C*Hh, Wh) -> (4, B, C, Hh, Wh) -> (4*B, C, Hh, Wh)
    # == torch.cat((LL, HL, LH, HH), dim=0); both reshapes are free (contiguous).
    return out.reshape(4, B, C, Hh, Wh).reshape(4 * B, C, Hh, Wh)


def dwt_ref(x):
    """Pure-JAX reference mirroring dwt_init exactly."""
    x01 = x[:, :, 0::2, :] / 2
    x02 = x[:, :, 1::2, :] / 2
    x1 = x01[:, :, :, 0::2]
    x2 = x02[:, :, :, 0::2]
    x3 = x01[:, :, :, 1::2]
    x4 = x02[:, :, :, 1::2]
    x_LL = x1 + x2 + x3 + x4
    x_HL = -x1 - x2 + x3 + x4
    x_LH = -x1 + x2 - x3 + x4
    x_HH = x1 - x2 - x3 + x4
    return jnp.concatenate((x_LL, x_HL, x_LH, x_HH), axis=0)


if __name__ == "__main__":
    key = jax.random.PRNGKey(0)
    x = jax.random.normal(key, (2, 4, 16, 16), dtype=jnp.float32)

    y = dwt(x)
    jax.block_until_ready(y)

    ref = dwt_ref(x)
    assert y.shape == ref.shape == (8, 4, 8, 8), (y.shape, ref.shape)
    assert jnp.allclose(y, ref, atol=1e-6, rtol=1e-6), "mismatch vs reference"

    print("KERNEL_OK")
</pallas_src>

<mosaic_0001>
module attributes {stable_mosaic.version = 11 : i64} {
  func.func @dwt_kernel(%arg0: i32, %arg1: memref<128x16xf32, #tpu.memory_space<vmem>>, %arg2: memref<16x8xf32, #tpu.memory_space<vmem>>, %arg3: memref<16x8xf32, #tpu.memory_space<vmem>>, %arg4: memref<4x64x8xf32, #tpu.memory_space<vmem>>) attributes {dimension_semantics = [#tpu.dimension_semantics<parallel>], iteration_bounds = array<i64: 1>, scalar_prefetch = 0 : i64, scratch_operands = 0 : i64, tpu.core_type = #tpu.core_type<tc>, window_params = [{transform_indices = @transform_0, window_bounds = array<i64: 128, 16>}, {pipeline_mode = #tpu.pipeline_mode<synchronous>, transform_indices = @transform_1, window_bounds = array<i64: 16, 8>}, {pipeline_mode = #tpu.pipeline_mode<synchronous>, transform_indices = @transform_2, window_bounds = array<i64: 16, 8>}, {transform_indices = @transform_3, window_bounds = array<i64: 4, 64, 8>}]} {
    %c0 = arith.constant 0 : index
    %c0_0 = arith.constant 0 : index
    %0 = tpu.strided_load %arg1[%c0, %c0_0] {strides = array<i32: 2, 1>} : memref<128x16xf32, #tpu.memory_space<vmem>>, vector<64x16xf32>
    %c1 = arith.constant 1 : index
    %c0_1 = arith.constant 0 : index
    %1 = tpu.strided_load %arg1[%c1, %c0_1] {strides = array<i32: 2, 1>} : memref<128x16xf32, #tpu.memory_space<vmem>>, vector<64x16xf32>
    %2 = arith.addf %0, %1 : vector<64x16xf32>
    %3 = arith.subf %1, %0 : vector<64x16xf32>
    %c0_2 = arith.constant 0 : index
    %c0_3 = arith.constant 0 : index
    %4 = vector.load %arg2[%c0_2, %c0_3] : memref<16x8xf32, #tpu.memory_space<vmem>>, vector<16x8xf32>
    %c0_4 = arith.constant 0 : index
    %c0_5 = arith.constant 0 : index
    %5 = vector.load %arg3[%c0_4, %c0_5] : memref<16x8xf32, #tpu.memory_space<vmem>>, vector<16x8xf32>
    %cst = arith.constant dense<0.000000e+00> : vector<64x8xf32>
    %6 = tpu.matmul %2, %4, %cst {dimension_numbers = #tpu.dot_dimension_numbers<[1], [0], [0], [1], [0, 0, 1, 1], [], []>} : vector<64x16xf32>, vector<16x8xf32>, vector<64x8xf32> -> vector<64x8xf32>
    %c0_6 = arith.constant 0 : index
    %c0_7 = arith.constant 0 : index
    %c0_8 = arith.constant 0 : index
    %7 = vector.load %arg4[%c0_6, %c0_7, %c0_8] : memref<4x64x8xf32, #tpu.memory_space<vmem>>, vector<1x64x8xf32>
    %8 = vector.shape_cast %7 : vector<1x64x8xf32> to vector<64x8xf32>
    %9 = vector.shape_cast %6 : vector<64x8xf32> to vector<1x64x8xf32>
    tpu.vector_store %arg4[%c0_6, %c0_7, %c0_8], %9 {strides = array<i32>} : memref<4x64x8xf32, #tpu.memory_space<vmem>>, vector<1x64x8xf32>,
    %cst_9 = arith.constant dense<0.000000e+00> : vector<64x8xf32>
    %10 = tpu.matmul %2, %5, %cst_9 {dimension_numbers = #tpu.dot_dimension_numbers<[1], [0], [0], [1], [0, 0, 1, 1], [], []>} : vector<64x16xf32>, vector<16x8xf32>, vector<64x8xf32> -> vector<64x8xf32>
    %c1_10 = arith.constant 1 : index
    %c0_11 = arith.constant 0 : index
    %c0_12 = arith.constant 0 : index
    %11 = vector.load %arg4[%c1_10, %c0_11, %c0_12] : memref<4x64x8xf32, #tpu.memory_space<vmem>>, vector<1x64x8xf32>
    %12 = vector.shape_cast %11 : vector<1x64x8xf32> to vector<64x8xf32>
    %13 = vector.shape_cast %10 : vector<64x8xf32> to vector<1x64x8xf32>
    tpu.vector_store %arg4[%c1_10, %c0_11, %c0_12], %13 {strides = array<i32>} : memref<4x64x8xf32, #tpu.memory_space<vmem>>, vector<1x64x8xf32>,
    %cst_13 = arith.constant dense<0.000000e+00> : vector<64x8xf32>
    %14 = tpu.matmul %3, %4, %cst_13 {dimension_numbers = #tpu.dot_dimension_numbers<[1], [0], [0], [1], [0, 0, 1, 1], [], []>} : vector<64x16xf32>, vector<16x8xf32>, vector<64x8xf32> -> vector<64x8xf32>
    %c2 = arith.constant 2 : index
    %c0_14 = arith.constant 0 : index
    %c0_15 = arith.constant 0 : index
    %15 = vector.load %arg4[%c2, %c0_14, %c0_15] : memref<4x64x8xf32, #tpu.memory_space<vmem>>, vector<1x64x8xf32>
    %16 = vector.shape_cast %15 : vector<1x64x8xf32> to vector<64x8xf32>
    %17 = vector.shape_cast %14 : vector<64x8xf32> to vector<1x64x8xf32>
    tpu.vector_store %arg4[%c2, %c0_14, %c0_15], %17 {strides = array<i32>} : memref<4x64x8xf32, #tpu.memory_space<vmem>>, vector<1x64x8xf32>,
    %cst_16 = arith.constant dense<0.000000e+00> : vector<64x8xf32>
    %18 = tpu.matmul %3, %5, %cst_16 {dimension_numbers = #tpu.dot_dimension_numbers<[1], [0], [0], [1], [0, 0, 1, 1], [], []>} : vector<64x16xf32>, vector<16x8xf32>, vector<64x8xf32> -> vector<64x8xf32>
    %c3 = arith.constant 3 : index
    %c0_17 = arith.constant 0 : index
    %c0_18 = arith.constant 0 : index
    %19 = vector.load %arg4[%c3, %c0_17, %c0_18] : memref<4x64x8xf32, #tpu.memory_space<vmem>>, vector<1x64x8xf32>
    %20 = vector.shape_cast %19 : vector<1x64x8xf32> to vector<64x8xf32>
    %21 = vector.shape_cast %18 : vector<64x8xf32> to vector<1x64x8xf32>
    tpu.vector_store %arg4[%c3, %c0_17, %c0_18], %21 {strides = array<i32>} : memref<4x64x8xf32, #tpu.memory_space<vmem>>, vector<1x64x8xf32>,
    return
  }
  func.func @transform_0(%arg0: i32) -> (i32, i32) {
    %c0_i32 = arith.constant 0 : i32
    %c0_i32_0 = arith.constant 0 : i32
    return %arg0, %c0_i32 : i32, i32
  }
  func.func @transform_1(%arg0: i32) -> (i32, i32) {
    %c0_i32 = arith.constant 0 : i32
    %c0_i32_0 = arith.constant 0 : i32
    %c0_i32_1 = arith.constant 0 : i32
    return %c0_i32, %c0_i32_0 : i32, i32
  }
  func.func @transform_2(%arg0: i32) -> (i32, i32) {
    %c0_i32 = arith.constant 0 : i32
    %c0_i32_0 = arith.constant 0 : i32
    %c0_i32_1 = arith.constant 0 : i32
    return %c0_i32, %c0_i32_0 : i32, i32
  }
  func.func @transform_3(%arg0: i32) -> (i32, i32, i32) {
    %c0_i32 = arith.constant 0 : i32
    %c0_i32_0 = arith.constant 0 : i32
    %c0_i32_1 = arith.constant 0 : i32
    return %c0_i32, %arg0, %c0_i32_0 : i32, i32, i32
  }
}

</mosaic_0001>

<llo_original>
// kernel: tpu_custom_call.1
$region0: #{tpu_custom_call.1}
  #allocation0 [shape = 'u32[]', space=smem, size = 0x4, offset = 0x4, fixed_abs, tag = 'smem constant byte address 0x4 - core index']
  #allocation1 [shape = 'u32[72,128]{1,0:T(1,128)}', space=vmem, size = 0x9000, scoped, tag = 'internal scratch']
  %s0 = inlined_call_operand.vmem [shape: f32[128,16], index: 0, kind: input, shape index: {}]
  %s1 = inlined_call_operand.vmem [shape: f32[16,8], index: 1, kind: input, shape index: {}]
  %s2 = inlined_call_operand.vmem [shape: f32[16,8], index: 2, kind: input, shape index: {}]
  %s3 = inlined_call_operand.vmem [shape: f32[4,64,8], index: 3, kind: output, shape index: {}]
  %s4 = sld [smem:[#allocation0]]
  $region22: #{tpu_custom_call.1} parent=0
    _
  %s6 = ssub.s32 1, %s4
  %s7 = scalar_select 0, %s6, %s4
  // Predicated region
  $region2: #{tpu_custom_call.1} parent=0 // pred_check
    _
  $region3: #{tpu_custom_call.1} parent=0 // pred_check_branch
    %9 = sbr.rel (0) target = $region5
  $region4: #{tpu_custom_call.1} parent=0 // pred_region
    _
  $region5: #{tpu_custom_call.1} parent=0 // pred_fallthru
    _
  // Predicated region
  $region6: #{tpu_custom_call.1} parent=0 // pred_check
    _
  $region7: #{tpu_custom_call.1} parent=0 // pred_check_branch
    %11 = sbr.rel (0) target = $region9
  $region8: #{tpu_custom_call.1} parent=0 // pred_region
    _
  $region9: #{tpu_custom_call.1} parent=0 // pred_fallthru
    _
  // Predicated region
  $region10: #{tpu_custom_call.1} parent=0 // pred_check
    _
  $region11: #{tpu_custom_call.1} parent=0 // pred_check_branch
    %13 = sbr.rel (0) target = $region13
  $region12: #{tpu_custom_call.1} parent=0 // pred_region
    _
  $region13: #{tpu_custom_call.1} parent=0 // pred_fallthru
    _
  %v14 = vld [vmem:[%s0] ss:$2 sm:$0xff]
  %s15 = scalar_lea.vmem %s0, 16
  %v16 = vld [vmem:[%s15] ss:$2 sm:$0xff]
  %s17 = scalar_lea.vmem %s0, 32
  %v18 = vld [vmem:[%s17] ss:$2 sm:$0xff]
  %s19 = scalar_lea.vmem %s0, 48
  %v20 = vld [vmem:[%s19] ss:$2 sm:$0xff]
  %s21 = scalar_lea.vmem %s0, 64
  %v22 = vld [vmem:[%s21] ss:$2 sm:$0xff]
  %s23 = scalar_lea.vmem %s0, 80
  %v24 = vld [vmem:[%s23] ss:$2 sm:$0xff]
  %s25 = scalar_lea.vmem %s0, 96
  %v26 = vld [vmem:[%s25] ss:$2 sm:$0xff]
  %s27 = scalar_lea.vmem %s0, 112
  %v28 = vld [vmem:[%s27] ss:$2 sm:$0xff]
  %s29 = scalar_lea.vmem %s0, 1
  %v30 = vld [vmem:[%s29] ss:$2 sm:$0xff]
  %s31 = scalar_lea.vmem %s0, 17
  %v32 = vld [vmem:[%s31] ss:$2 sm:$0xff]
  %s33 = scalar_lea.vmem %s0, 33
  %v34 = vld [vmem:[%s33] ss:$2 sm:$0xff]
  %s35 = scalar_lea.vmem %s0, 49
  %v36 = vld [vmem:[%s35] ss:$2 sm:$0xff]
  %s37 = scalar_lea.vmem %s0, 65
  %v38 = vld [vmem:[%s37] ss:$2 sm:$0xff]
  %s39 = scalar_lea.vmem %s0, 81
  %v40 = vld [vmem:[%s39] ss:$2 sm:$0xff]
  %s41 = scalar_lea.vmem %s0, 97
  %v42 = vld [vmem:[%s41] ss:$2 sm:$0xff]
  %s43 = scalar_lea.vmem %s0, 113
  %v44 = vld [vmem:[%s43] ss:$2 sm:$0xff]
  %v45 = vadd.f32 %v14, %v30
  %v46 = vadd.f32 %v16, %v32
  %v47 = vadd.f32 %v18, %v34
  %v48 = vadd.f32 %v20, %v36
  %v49 = vadd.f32 %v22, %v38
  %v50 = vadd.f32 %v24, %v40
  %v51 = vadd.f32 %v26, %v42
  %v52 = vadd.f32 %v28, %v44
  %v53 = vsub.f32 %v30, %v14
  %v54 = vsub.f32 %v32, %v16
  %v55 = vsub.f32 %v34, %v18
  %v56 = vsub.f32 %v36, %v20
  %v57 = vsub.f32 %v38, %v22
  %v58 = vsub.f32 %v40, %v24
  %v59 = vsub.f32 %v42, %v26
  %v60 = vsub.f32 %v44, %v28
  %v61 = vld [vmem:[%s1] sm:$0xff]
  %v62 = vld [vmem:[%s1 + $0x8] sm:$0xff]
  %v63 = vld [vmem:[%s2] sm:$0xff]
  %v64 = vld [vmem:[%s2 + $0x8] sm:$0xff]
  %vm65 = vcmask 130048
  %v67 = vsel %vm65, %v45, 0
  %v70 = vsel %vm65, %v46, 0
  %v73 = vsel %vm65, %v47, 0
  %v76 = vsel %vm65, %v48, 0
  %v79 = vsel %vm65, %v49, 0
  %v82 = vsel %vm65, %v50, 0
  %v85 = vsel %vm65, %v51, 0
  %v88 = vsel %vm65, %v52, 0
  %90 = vmatpush.msra.mxu0 0.0
  %91 = vmatpush.msra.mxu0 0.0
  %92 = vmatpush.msra.mxu0 0.0
  %93 = vmatpush.msra.mxu0 0.0
  %94 = vmatpush.msra.mxu0 0.0
  %95 = vmatpush.msra.mxu0 0.0
  %96 = vmatpush.msra.mxu0 0.0
  %97 = vmatpush.msra.mxu0 0.0
  %98 = vmatpush.msra.mxu0 0.0
  %99 = vmatpush.msra.mxu0 0.0
  %100 = vmatpush.msra.mxu0 0.0
  %101 = vmatpush.msra.mxu0 0.0
  %102 = vmatpush.msra.mxu0 0.0
  %103 = vmatpush.msra.mxu0 0.0
  %104 = vmatpush.msra.mxu0 %v62
  %105 = vmatpush.msra.mxu0 %v61
  %106 = vmatmul.f32.gmra.mxu0 %v67
  %v107 = vpop.f32.mrf.mxu0
  %v108 = vadd.f32 0.0, %v107
  %109 = vmatmul.f32.gmra.mxu0 %v70
  %v110 = vpop.f32.mrf.mxu0
  %v111 = vadd.f32 0.0, %v110
  %112 = vmatmul.f32.gmra.mxu0 %v73
  %v113 = vpop.f32.mrf.mxu0
  %v114 = vadd.f32 0.0, %v113
  %115 = vmatmul.f32.gmra.mxu0 %v76
  %v116 = vpop.f32.mrf.mxu0
  %v117 = vadd.f32 0.0, %v116
  %118 = vmatmul.f32.gmra.mxu0 %v79
  %v119 = vpop.f32.mrf.mxu0
  %v120 = vadd.f32 0.0, %v119
  %121 = vmatmul.f32.gmra.mxu0 %v82
  %v122 = vpop.f32.mrf.mxu0
  %v123 = vadd.f32 0.0, %v122
  %124 = vmatmul.f32.gmra.mxu0 %v85
  %v125 = vpop.f32.mrf.mxu0
  %v126 = vadd.f32 0.0, %v125
  %127 = vmatmul.f32.gmra.mxu0 %v88
  %v128 = vpop.f32.mrf.mxu0
  %v129 = vadd.f32 0.0, %v128
  %130 = vdwg.mxu0
  %vm131 = vcmask 64512
  %132 = vst.msk [vmem:[%s3] sm:$0xff] %vm131, %v108
  %133 = vst.msk [vmem:[%s3 + $0x8] sm:$0xff] %vm131, %v111
  %134 = vst.msk [vmem:[%s3 + $0x10] sm:$0xff] %vm131, %v114
  %135 = vst.msk [vmem:[%s3 + $0x18] sm:$0xff] %vm131, %v117
  %136 = vst.msk [vmem:[%s3 + $0x20] sm:$0xff] %vm131, %v120
  %137 = vst.msk [vmem:[%s3 + $0x28] sm:$0xff] %vm131, %v123
  %138 = vst.msk [vmem:[%s3 + $0x30] sm:$0xff] %vm131, %v126
  %139 = vst.msk [vmem:[%s3 + $0x38] sm:$0xff] %vm131, %v129
  %140 = vmatpush.msra.mxu0 0.0
  %141 = vmatpush.msra.mxu0 0.0
  %142 = vmatpush.msra.mxu0 0.0
  %143 = vmatpush.msra.mxu0 0.0
  %144 = vmatpush.msra.mxu0 0.0
  %145 = vmatpush.msra.mxu0 0.0
  %146 = vmatpush.msra.mxu0 0.0
  %147 = vmatpush.msra.mxu0 0.0
  %148 = vmatpush.msra.mxu0 0.0
  %149 = vmatpush.msra.mxu0 0.0
  %150 = vmatpush.msra.mxu0 0.0
  %151 = vmatpush.msra.mxu0 0.0
  %152 = vmatpush.msra.mxu0 0.0
  %153 = vmatpush.msra.mxu0 0.0
  %154 = vmatpush.msra.mxu0 %v64
  %155 = vmatpush.msra.mxu0 %v63
  %156 = vmatmul.f32.gmra.mxu0 %v67
  %v157 = vpop.f32.mrf.mxu0
  %v158 = vadd.f32 0.0, %v157
  %159 = vmatmul.f32.gmra.mxu0 %v70
  %v160 = vpop.f32.mrf.mxu0
  %v161 = vadd.f32 0.0, %v160
  %162 = vmatmul.f32.gmra.mxu0 %v73
  %v163 = vpop.f32.mrf.mxu0
  %v164 = vadd.f32 0.0, %v163
  %165 = vmatmul.f32.gmra.mxu0 %v76
  %v166 = vpop.f32.mrf.mxu0
  %v167 = vadd.f32 0.0, %v166
  %168 = vmatmul.f32.gmra.mxu0 %v79
  %v169 = vpop.f32.mrf.mxu0
  %v170 = vadd.f32 0.0, %v169
  %171 = vmatmul.f32.gmra.mxu0 %v82
  %v172 = vpop.f32.mrf.mxu0
  %v173 = vadd.f32 0.0, %v172
  %174 = vmatmul.f32.gmra.mxu0 %v85
  %v175 = vpop.f32.mrf.mxu0
  %v176 = vadd.f32 0.0, %v175
  %177 = vmatmul.f32.gmra.mxu0 %v88
  %v178 = vpop.f32.mrf.mxu0
  %v179 = vadd.f32 0.0, %v178
  %180 = vdwg.mxu0
  %s181 = scalar_lea.vmem %s3, 64
  %182 = vst.msk [vmem:[%s181] sm:$0xff] %vm131, %v158
  %183 = vst.msk [vmem:[%s181 + $0x8] sm:$0xff] %vm131, %v161
  %184 = vst.msk [vmem:[%s181 + $0x10] sm:$0xff] %vm131, %v164
  %185 = vst.msk [vmem:[%s181 + $0x18] sm:$0xff] %vm131, %v167
  %186 = vst.msk [vmem:[%s181 + $0x20] sm:$0xff] %vm131, %v170
  %187 = vst.msk [vmem:[%s181 + $0x28] sm:$0xff] %vm131, %v173
  %188 = vst.msk [vmem:[%s181 + $0x30] sm:$0xff] %vm131, %v176
  %189 = vst.msk [vmem:[%s181 + $0x38] sm:$0xff] %vm131, %v179
  %v191 = vsel %vm65, %v53, 0
  %v194 = vsel %vm65, %v54, 0
  %v197 = vsel %vm65, %v55, 0
  %v200 = vsel %vm65, %v56, 0
  %v203 = vsel %vm65, %v57, 0
  %v206 = vsel %vm65, %v58, 0
  %v209 = vsel %vm65, %v59, 0
  %v212 = vsel %vm65, %v60, 0
  %214 = vmatpush.msra.mxu0 0.0
  %215 = vmatpush.msra.mxu0 0.0
  %216 = vmatpush.msra.mxu0 0.0
  %217 = vmatpush.msra.mxu0 0.0
  %218 = vmatpush.msra.mxu0 0.0
  %219 = vmatpush.msra.mxu0 0.0
  %220 = vmatpush.msra.mxu0 0.0
  %221 = vmatpush.msra.mxu0 0.0
  %222 = vmatpush.msra.mxu0 0.0
  %223 = vmatpush.msra.mxu0 0.0
  %224 = vmatpush.msra.mxu0 0.0
  %225 = vmatpush.msra.mxu0 0.0
  %226 = vmatpush.msra.mxu0 0.0
  %227 = vmatpush.msra.mxu0 0.0
  %228 = vmatpush.msra.mxu0 %v62
  %229 = vmatpush.msra.mxu0 %v61
  %230 = vmatmul.f32.gmra.mxu0 %v191
  %v231 = vpop.f32.mrf.mxu0
  %v232 = vadd.f32 0.0, %v231
  %233 = vmatmul.f32.gmra.mxu0 %v194
  %v234 = vpop.f32.mrf.mxu0
  %v235 = vadd.f32 0.0, %v234
  %236 = vmatmul.f32.gmra.mxu0 %v197
  %v237 = vpop.f32.mrf.mxu0
  %v238 = vadd.f32 0.0, %v237
  %239 = vmatmul.f32.gmra.mxu0 %v200
  %v240 = vpop.f32.mrf.mxu0
  %v241 = vadd.f32 0.0, %v240
  %242 = vmatmul.f32.gmra.mxu0 %v203
  %v243 = vpop.f32.mrf.mxu0
  %v244 = vadd.f32 0.0, %v243
  %245 = vmatmul.f32.gmra.mxu0 %v206
  %v246 = vpop.f32.mrf.mxu0
  %v247 = vadd.f32 0.0, %v246
  %248 = vmatmul.f32.gmra.mxu0 %v209
  %v249 = vpop.f32.mrf.mxu0
  %v250 = vadd.f32 0.0, %v249
  %251 = vmatmul.f32.gmra.mxu0 %v212
  %v252 = vpop.f32.mrf.mxu0
  %v253 = vadd.f32 0.0, %v252
  %254 = vdwg.mxu0
  %s255 = scalar_lea.vmem %s3, 128
  %256 = vst.msk [vmem:[%s255] sm:$0xff] %vm131, %v232
  %257 = vst.msk [vmem:[%s255 + $0x8] sm:$0xff] %vm131, %v235
  %258 = vst.msk [vmem:[%s255 + $0x10] sm:$0xff] %vm131, %v238
  %259 = vst.msk [vmem:[%s255 + $0x18] sm:$0xff] %vm131, %v241
  %260 = vst.msk [vmem:[%s255 + $0x20] sm:$0xff] %vm131, %v244
  %261 = vst.msk [vmem:[%s255 + $0x28] sm:$0xff] %vm131, %v247
  %262 = vst.msk [vmem:[%s255 + $0x30] sm:$0xff] %vm131, %v250
  %263 = vst.msk [vmem:[%s255 + $0x38] sm:$0xff] %vm131, %v253
  %264 = vmatpush.msra.mxu0 0.0
  %265 = vmatpush.msra.mxu0 0.0
  %266 = vmatpush.msra.mxu0 0.0
  %267 = vmatpush.msra.mxu0 0.0
  %268 = vmatpush.msra.mxu0 0.0
  %269 = vmatpush.msra.mxu0 0.0
  %270 = vmatpush.msra.mxu0 0.0
  %271 = vmatpush.msra.mxu0 0.0
  %272 = vmatpush.msra.mxu0 0.0
  %273 = vmatpush.msra.mxu0 0.0
  %274 = vmatpush.msra.mxu0 0.0
  %275 = vmatpush.msra.mxu0 0.0
  %276 = vmatpush.msra.mxu0 0.0
  %277 = vmatpush.msra.mxu0 0.0
  %278 = vmatpush.msra.mxu0 %v64
  %279 = vmatpush.msra.mxu0 %v63
  %280 = vmatmul.f32.gmra.mxu0 %v191
  %v281 = vpop.f32.mrf.mxu0
  %v282 = vadd.f32 0.0, %v281
  %283 = vmatmul.f32.gmra.mxu0 %v194
  %v284 = vpop.f32.mrf.mxu0
  %v285 = vadd.f32 0.0, %v284
  %286 = vmatmul.f32.gmra.mxu0 %v197
  %v287 = vpop.f32.mrf.mxu0
  %v288 = vadd.f32 0.0, %v287
  %289 = vmatmul.f32.gmra.mxu0 %v200
  %v290 = vpop.f32.mrf.mxu0
  %v291 = vadd.f32 0.0, %v290
  %292 = vmatmul.f32.gmra.mxu0 %v203
  %v293 = vpop.f32.mrf.mxu0
  %v294 = vadd.f32 0.0, %v293
  %295 = vmatmul.f32.gmra.mxu0 %v206
  %v296 = vpop.f32.mrf.mxu0
  %v297 = vadd.f32 0.0, %v296
  %298 = vmatmul.f32.gmra.mxu0 %v209
  %v299 = vpop.f32.mrf.mxu0
  %v300 = vadd.f32 0.0, %v299
  %301 = vmatmul.f32.gmra.mxu0 %v212
  %v302 = vpop.f32.mrf.mxu0
  %v303 = vadd.f32 0.0, %v302
  %304 = vdwg.mxu0
  %s305 = scalar_lea.vmem %s3, 192
  %306 = vst.msk [vmem:[%s305] sm:$0xff] %vm131, %v282
  %307 = vst.msk [vmem:[%s305 + $0x8] sm:$0xff] %vm131, %v285
  %308 = vst.msk [vmem:[%s305 + $0x10] sm:$0xff] %vm131, %v288
  %309 = vst.msk [vmem:[%s305 + $0x18] sm:$0xff] %vm131, %v291
  %310 = vst.msk [vmem:[%s305 + $0x20] sm:$0xff] %vm131, %v294
  %311 = vst.msk [vmem:[%s305 + $0x28] sm:$0xff] %vm131, %v297
  %312 = vst.msk [vmem:[%s305 + $0x30] sm:$0xff] %vm131, %v300
  %313 = vst.msk [vmem:[%s305 + $0x38] sm:$0xff] %vm131, %v303
  // Predicated region
  $region14: #{tpu_custom_call.1} parent=0 // pred_check
    _
  $region15: #{tpu_custom_call.1} parent=0 // pred_check_branch
    %315 = sbr.rel (0) target = $region17
  $region16: #{tpu_custom_call.1} parent=0 // pred_region
    _
  $region17: #{tpu_custom_call.1} parent=0 // pred_fallthru
    _
  // Predicated region
  $region18: #{tpu_custom_call.1} parent=0 // pred_check
    _
  $region19: #{tpu_custom_call.1} parent=0 // pred_check_branch
    %317 = sbr.rel (0) target = $region21
  $region20: #{tpu_custom_call.1} parent=0 // pred_region
    _
  $region21: #{tpu_custom_call.1} parent=0 // pred_fallthru
    _

</llo_original>
